<compile_context>
chip_gen: v6e
topology: v6e:2x2x1
jax: 0.10.0
libtpu: 0.0.40
codegen_flags: <defaults>
</compile_context>

<pallas_src>
import jax
import jax.numpy as jnp
import numpy as np
from jax.experimental import pallas as pl
from jax.experimental.pallas import tpu as pltpu


def _lstm_recurrence_kernel(gates_in_ref, whh_ref, h0_ref, c0_ref,
                            hs_ref, hout_ref, cout_ref):
    """Serial LSTM recurrence.

    gates_in_ref : (L, B, 4H)  precomputed  X @ W_ih^T + (b_ih + b_hh)
    whh_ref      : (H, 4H)     W_hh^T
    h0_ref/c0_ref: (B, H)      initial state
    hs_ref       : (L, B, H)   hidden state at every step (for the projection)
    hout/cout    : (B, H)      final state
    """
    L = gates_in_ref.shape[0]
    H = whh_ref.shape[0]

    def step(t, carry):
        h, c = carry
        # Serial critical path: one small MXU matmul + element-wise gates.
        gates = gates_in_ref[t] + jnp.dot(
            h, whh_ref[...], preferred_element_type=jnp.float32)   # (B, 4H)

        # Two full-vreg EUP passes instead of four sub-vreg ones.
        sig = jax.nn.sigmoid(gates)
        tnh = jnp.tanh(gates)

        # PyTorch LSTM gate order: i, f, g, o
        i_g = sig[:, 0 * H:1 * H]
        f_g = sig[:, 1 * H:2 * H]
        g_g = tnh[:, 2 * H:3 * H]
        o_g = sig[:, 3 * H:4 * H]

        c_new = f_g * c + i_g * g_g
        h_new = o_g * jnp.tanh(c_new)

        hs_ref[t] = h_new
        return (h_new, c_new)

    h_last, c_last = jax.lax.fori_loop(
        0, L, step, (h0_ref[...], c0_ref[...]), unroll=True)

    hout_ref[...] = h_last
    cout_ref[...] = c_last


def _lstm_recurrence(gates_in, w_hh_t, h0, c0):
    """Single Pallas invocation running the whole L-step recurrence."""
    L, B, G = gates_in.shape
    H = w_hh_t.shape[0]

    hs, last_h, last_c = pl.pallas_call(
        _lstm_recurrence_kernel,
        out_shape=(
            jax.ShapeDtypeStruct((L, B, H), jnp.float32),   # hs
            jax.ShapeDtypeStruct((B, H), jnp.float32),      # last hidden
            jax.ShapeDtypeStruct((B, H), jnp.float32),      # last cell
        ),
        grid=(1,),
        in_specs=[
            pl.BlockSpec((L, B, G), lambda i: (0, 0, 0)),   # gates_in (resident)
            pl.BlockSpec((H, G), lambda i: (0, 0)),         # W_hh^T
            pl.BlockSpec((B, H), lambda i: (0, 0)),         # h0
            pl.BlockSpec((B, H), lambda i: (0, 0)),         # c0
        ],
        out_specs=(
            pl.BlockSpec((L, B, H), lambda i: (0, 0, 0)),
            pl.BlockSpec((B, H), lambda i: (0, 0)),
            pl.BlockSpec((B, H), lambda i: (0, 0)),
        ),
        compiler_params=pltpu.CompilerParams(
            dimension_semantics=("arbitrary",)),            # recurrence is serial
    )(gates_in, w_hh_t, h0, c0)
    return hs, last_h, last_c


def char_decoder_forward(char_ids, params, dec_hidden=None):
    """JAX/Pallas equivalent of CharDecoder.forward.

    char_ids: (L, B) int32
    returns scores (L, B, V), (last_hidden (1,B,H), last_cell (1,B,H))
    """
    emb = params["emb"]                       # (V, E), row 0 zeros (padding_idx=0)
    w_ih = params["w_ih"]                     # (4H, E)
    w_hh = params["w_hh"]                     # (4H, H)
    b = params["b_ih"] + params["b_hh"]       # (4H,)
    w_proj = params["w_proj"]                 # (V, H)
    b_proj = params["b_proj"]                 # (V,)

    L, B = char_ids.shape
    V, E = emb.shape
    H = w_hh.shape[1]

    if dec_hidden is None:
        h0 = jnp.zeros((1, B, H), jnp.float32)
        c0 = jnp.zeros((1, B, H), jnp.float32)
    else:
        h0, c0 = dec_hidden

    # Embedding lookup (gather) — outside the kernel.
    X = jnp.take(emb, char_ids, axis=0)                       # (L, B, E)

    # Hoisted input projection: independent of h, so off the serial path.
    gates_in = (X.reshape(L * B, E) @ w_ih.T + b).reshape(L, B, 4 * H)

    # Serial recurrence in a single Pallas call.
    hs, last_h, last_c = _lstm_recurrence(gates_in, w_hh.T, h0[0], c0[0])

    # Hoisted vocab projection: one batched, lane-dense matmul post-loop.
    scores = (hs.reshape(L * B, H) @ w_proj.T + b_proj).reshape(L, B, V)

    return scores, (last_h[None], last_c[None])


# TODO(synk): train_forward (cross-entropy loss) and decode_greedy (host-side
# greedy loop) are not implemented; only the forward pass is kernelized.


def _reference_forward(char_ids, params, dec_hidden):
    """Plain-JAX reference (lax.scan) for correctness checking."""
    emb, w_ih, w_hh = params["emb"], params["w_ih"], params["w_hh"]
    b = params["b_ih"] + params["b_hh"]
    w_proj, b_proj = params["w_proj"], params["b_proj"]
    H = w_hh.shape[1]
    X = jnp.take(emb, char_ids, axis=0)
    h0, c0 = dec_hidden

    def step(carry, x_t):
        h, c = carry
        gates = x_t @ w_ih.T + h @ w_hh.T + b
        i = jax.nn.sigmoid(gates[:, 0*H:1*H])
        f = jax.nn.sigmoid(gates[:, 1*H:2*H])
        g = jnp.tanh(gates[:, 2*H:3*H])
        o = jax.nn.sigmoid(gates[:, 3*H:4*H])
        c_new = f * c + i * g
        h_new = o * jnp.tanh(c_new)
        return (h_new, c_new), h_new

    (h_last, c_last), hs = jax.lax.scan(step, (h0[0], c0[0]), X)
    scores = hs @ w_proj.T + b_proj
    return scores, (h_last[None], c_last[None])


def init_params(key, hidden_size, char_embedding_size, vocab_size):
    ks = jax.random.split(key, 7)
    H, E, V = hidden_size, char_embedding_size, vocab_size
    s = 0.1
    emb = s * jax.random.normal(ks[0], (V, E), jnp.float32)
    emb = emb.at[0].set(0.0)                       # padding_idx=0
    return {
        "emb": emb,
        "w_ih": s * jax.random.normal(ks[1], (4 * H, E), jnp.float32),
        "w_hh": s * jax.random.normal(ks[2], (4 * H, H), jnp.float32),
        "b_ih": s * jax.random.normal(ks[3], (4 * H,), jnp.float32),
        "b_hh": s * jax.random.normal(ks[4], (4 * H,), jnp.float32),
        "w_proj": s * jax.random.normal(ks[5], (V, H), jnp.float32),
        "b_proj": s * jax.random.normal(ks[6], (V,), jnp.float32),
    }


if __name__ == "__main__":
    L, B = 8, 4                 # (length, batch)
    H, E, V = 32, 50, 30        # hidden_size, char_embedding_size, len(char2id)

    key = jax.random.PRNGKey(0)
    kp, ki, kh, kc = jax.random.split(key, 4)
    params = init_params(kp, H, E, V)

    char_ids = jax.random.randint(ki, (L, B), 0, V, dtype=jnp.int32)
    h0 = 0.1 * jax.random.normal(kh, (1, B, H), jnp.float32)
    c0 = 0.1 * jax.random.normal(kc, (1, B, H), jnp.float32)

    fwd = jax.jit(char_decoder_forward)
    scores, (last_h, last_c) = fwd(char_ids, params, (h0, c0))
    jax.block_until_ready((scores, last_h, last_c))

    ref_scores, (ref_h, ref_c) = _reference_forward(char_ids, params, (h0, c0))
    assert scores.shape == (L, B, V)
    assert last_h.shape == (1, B, H) and last_c.shape == (1, B, H)
    np.testing.assert_allclose(np.asarray(scores), np.asarray(ref_scores),
                               atol=1e-4, rtol=1e-4)
    np.testing.assert_allclose(np.asarray(last_h), np.asarray(ref_h),
                               atol=1e-4, rtol=1e-4)
    np.testing.assert_allclose(np.asarray(last_c), np.asarray(ref_c),
                               atol=1e-4, rtol=1e-4)

    print("KERNEL_OK")
</pallas_src>

<mosaic_0001>
module attributes {stable_mosaic.version = 11 : i64} {
  func.func @_lstm_recurrence_kernel(%arg0: i32, %arg1: memref<8x4x128xf32, #tpu.memory_space<vmem>>, %arg2: memref<32x128xf32, #tpu.memory_space<vmem>>, %arg3: memref<4x32xf32, #tpu.memory_space<vmem>>, %arg4: memref<4x32xf32, #tpu.memory_space<vmem>>, %arg5: memref<8x4x32xf32, #tpu.memory_space<vmem>>, %arg6: memref<4x32xf32, #tpu.memory_space<vmem>>, %arg7: memref<4x32xf32, #tpu.memory_space<vmem>>) attributes {dimension_semantics = [#tpu.dimension_semantics<arbitrary>], iteration_bounds = array<i64: 1>, scalar_prefetch = 0 : i64, scratch_operands = 0 : i64, tpu.core_type = #tpu.core_type<tc>, window_params = [{pipeline_mode = #tpu.pipeline_mode<synchronous>, transform_indices = @transform_0, window_bounds = array<i64: 8, 4, 128>}, {pipeline_mode = #tpu.pipeline_mode<synchronous>, transform_indices = @transform_1, window_bounds = array<i64: 32, 128>}, {pipeline_mode = #tpu.pipeline_mode<synchronous>, transform_indices = @transform_2, window_bounds = array<i64: 4, 32>}, {pipeline_mode = #tpu.pipeline_mode<synchronous>, transform_indices = @transform_3, window_bounds = array<i64: 4, 32>}, {pipeline_mode = #tpu.pipeline_mode<synchronous>, transform_indices = @transform_4, window_bounds = array<i64: 8, 4, 32>}, {pipeline_mode = #tpu.pipeline_mode<synchronous>, transform_indices = @transform_5, window_bounds = array<i64: 4, 32>}, {pipeline_mode = #tpu.pipeline_mode<synchronous>, transform_indices = @transform_6, window_bounds = array<i64: 4, 32>}]} {
    %c0 = arith.constant 0 : index
    %c0_0 = arith.constant 0 : index
    %0 = vector.load %arg3[%c0, %c0_0] : memref<4x32xf32, #tpu.memory_space<vmem>>, vector<4x32xf32>
    %c0_1 = arith.constant 0 : index
    %c0_2 = arith.constant 0 : index
    %1 = vector.load %arg4[%c0_1, %c0_2] : memref<4x32xf32, #tpu.memory_space<vmem>>, vector<4x32xf32>
    %c0_i32 = arith.constant 0 : i32
    %2 = arith.index_cast %c0_i32 : i32 to index
    %c0_3 = arith.constant 0 : index
    %c0_4 = arith.constant 0 : index
    %3 = vector.load %arg1[%2, %c0_3, %c0_4] : memref<8x4x128xf32, #tpu.memory_space<vmem>>, vector<1x4x128xf32>
    %4 = vector.shape_cast %3 : vector<1x4x128xf32> to vector<4x128xf32>
    %c0_5 = arith.constant 0 : index
    %c0_6 = arith.constant 0 : index
    %5 = vector.load %arg2[%c0_5, %c0_6] : memref<32x128xf32, #tpu.memory_space<vmem>>, vector<32x128xf32>
    %cst = arith.constant dense<0.000000e+00> : vector<4x128xf32>
    %6 = tpu.matmul %0, %5, %cst {dimension_numbers = #tpu.dot_dimension_numbers<[1], [0], [0], [1], [0, 0, 1, 1], [], []>} : vector<4x32xf32>, vector<32x128xf32>, vector<4x128xf32> -> vector<4x128xf32>
    %7 = arith.addf %4, %6 : vector<4x128xf32>
    %8 = arith.negf %7 : vector<4x128xf32>
    %9 = math.exp %8 : vector<4x128xf32>
    %cst_7 = arith.constant 1.000000e+00 : f32
    %10 = vector.broadcast %cst_7 : f32 to vector<4x128xf32>
    %11 = arith.addf %10, %9 : vector<4x128xf32>
    %12 = arith.divf %10, %11 : vector<4x128xf32>
    %13 = math.tanh %7 : vector<4x128xf32>
    %14 = vector.extract_strided_slice %12 {offsets = [0, 0], sizes = [4, 32], strides = [1, 1]} : vector<4x128xf32> to vector<4x32xf32>
    %15 = vector.extract_strided_slice %12 {offsets = [0, 32], sizes = [4, 32], strides = [1, 1]} : vector<4x128xf32> to vector<4x32xf32>
    %16 = vector.extract_strided_slice %13 {offsets = [0, 64], sizes = [4, 32], strides = [1, 1]} : vector<4x128xf32> to vector<4x32xf32>
    %17 = vector.extract_strided_slice %12 {offsets = [0, 96], sizes = [4, 32], strides = [1, 1]} : vector<4x128xf32> to vector<4x32xf32>
    %18 = arith.mulf %15, %1 : vector<4x32xf32>
    %19 = arith.mulf %14, %16 : vector<4x32xf32>
    %20 = arith.addf %18, %19 : vector<4x32xf32>
    %21 = math.tanh %20 : vector<4x32xf32>
    %22 = arith.mulf %17, %21 : vector<4x32xf32>
    %23 = arith.index_cast %c0_i32 : i32 to index
    %c0_8 = arith.constant 0 : index
    %c0_9 = arith.constant 0 : index
    %24 = vector.load %arg5[%23, %c0_8, %c0_9] : memref<8x4x32xf32, #tpu.memory_space<vmem>>, vector<1x4x32xf32>
    %25 = vector.shape_cast %24 : vector<1x4x32xf32> to vector<4x32xf32>
    %26 = vector.shape_cast %22 : vector<4x32xf32> to vector<1x4x32xf32>
    tpu.vector_store %arg5[%23, %c0_8, %c0_9], %26 {strides = array<i32>} : memref<8x4x32xf32, #tpu.memory_space<vmem>>, vector<1x4x32xf32>,
    %c1_i32 = arith.constant 1 : i32
    %27 = arith.index_cast %c1_i32 : i32 to index
    %c0_10 = arith.constant 0 : index
    %c0_11 = arith.constant 0 : index
    %28 = vector.load %arg1[%27, %c0_10, %c0_11] : memref<8x4x128xf32, #tpu.memory_space<vmem>>, vector<1x4x128xf32>
    %29 = vector.shape_cast %28 : vector<1x4x128xf32> to vector<4x128xf32>
    %c0_12 = arith.constant 0 : index
    %c0_13 = arith.constant 0 : index
    %30 = vector.load %arg2[%c0_12, %c0_13] : memref<32x128xf32, #tpu.memory_space<vmem>>, vector<32x128xf32>
    %cst_14 = arith.constant dense<0.000000e+00> : vector<4x128xf32>
    %31 = tpu.matmul %22, %30, %cst_14 {dimension_numbers = #tpu.dot_dimension_numbers<[1], [0], [0], [1], [0, 0, 1, 1], [], []>} : vector<4x32xf32>, vector<32x128xf32>, vector<4x128xf32> -> vector<4x128xf32>
    %32 = arith.addf %29, %31 : vector<4x128xf32>
    %33 = arith.negf %32 : vector<4x128xf32>
    %34 = math.exp %33 : vector<4x128xf32>
    %cst_15 = arith.constant 1.000000e+00 : f32
    %35 = vector.broadcast %cst_15 : f32 to vector<4x128xf32>
    %36 = arith.addf %35, %34 : vector<4x128xf32>
    %37 = arith.divf %35, %36 : vector<4x128xf32>
    %38 = math.tanh %32 : vector<4x128xf32>
    %39 = vector.extract_strided_slice %37 {offsets = [0, 0], sizes = [4, 32], strides = [1, 1]} : vector<4x128xf32> to vector<4x32xf32>
    %40 = vector.extract_strided_slice %37 {offsets = [0, 32], sizes = [4, 32], strides = [1, 1]} : vector<4x128xf32> to vector<4x32xf32>
    %41 = vector.extract_strided_slice %38 {offsets = [0, 64], sizes = [4, 32], strides = [1, 1]} : vector<4x128xf32> to vector<4x32xf32>
    %42 = vector.extract_strided_slice %37 {offsets = [0, 96], sizes = [4, 32], strides = [1, 1]} : vector<4x128xf32> to vector<4x32xf32>
    %43 = arith.mulf %40, %20 : vector<4x32xf32>
    %44 = arith.mulf %39, %41 : vector<4x32xf32>
    %45 = arith.addf %43, %44 : vector<4x32xf32>
    %46 = math.tanh %45 : vector<4x32xf32>
    %47 = arith.mulf %42, %46 : vector<4x32xf32>
    %48 = arith.index_cast %c1_i32 : i32 to index
    %c0_16 = arith.constant 0 : index
    %c0_17 = arith.constant 0 : index
    %49 = vector.load %arg5[%48, %c0_16, %c0_17] : memref<8x4x32xf32, #tpu.memory_space<vmem>>, vector<1x4x32xf32>
    %50 = vector.shape_cast %49 : vector<1x4x32xf32> to vector<4x32xf32>
    %51 = vector.shape_cast %47 : vector<4x32xf32> to vector<1x4x32xf32>
    tpu.vector_store %arg5[%48, %c0_16, %c0_17], %51 {strides = array<i32>} : memref<8x4x32xf32, #tpu.memory_space<vmem>>, vector<1x4x32xf32>,
    %c2_i32 = arith.constant 2 : i32
    %52 = arith.index_cast %c2_i32 : i32 to index
    %c0_18 = arith.constant 0 : index
    %c0_19 = arith.constant 0 : index
    %53 = vector.load %arg1[%52, %c0_18, %c0_19] : memref<8x4x128xf32, #tpu.memory_space<vmem>>, vector<1x4x128xf32>
    %54 = vector.shape_cast %53 : vector<1x4x128xf32> to vector<4x128xf32>
    %c0_20 = arith.constant 0 : index
    %c0_21 = arith.constant 0 : index
    %55 = vector.load %arg2[%c0_20, %c0_21] : memref<32x128xf32, #tpu.memory_space<vmem>>, vector<32x128xf32>
    %cst_22 = arith.constant dense<0.000000e+00> : vector<4x128xf32>
    %56 = tpu.matmul %47, %55, %cst_22 {dimension_numbers = #tpu.dot_dimension_numbers<[1], [0], [0], [1], [0, 0, 1, 1], [], []>} : vector<4x32xf32>, vector<32x128xf32>, vector<4x128xf32> -> vector<4x128xf32>
    %57 = arith.addf %54, %56 : vector<4x128xf32>
    %58 = arith.negf %57 : vector<4x128xf32>
    %59 = math.exp %58 : vector<4x128xf32>
    %cst_23 = arith.constant 1.000000e+00 : f32
    %60 = vector.broadcast %cst_23 : f32 to vector<4x128xf32>
    %61 = arith.addf %60, %59 : vector<4x128xf32>
    %62 = arith.divf %60, %61 : vector<4x128xf32>
    %63 = math.tanh %57 : vector<4x128xf32>
    %64 = vector.extract_strided_slice %62 {offsets = [0, 0], sizes = [4, 32], strides = [1, 1]} : vector<4x128xf32> to vector<4x32xf32>
    %65 = vector.extract_strided_slice %62 {offsets = [0, 32], sizes = [4, 32], strides = [1, 1]} : vector<4x128xf32> to vector<4x32xf32>
    %66 = vector.extract_strided_slice %63 {offsets = [0, 64], sizes = [4, 32], strides = [1, 1]} : vector<4x128xf32> to vector<4x32xf32>
    %67 = vector.extract_strided_slice %62 {offsets = [0, 96], sizes = [4, 32], strides = [1, 1]} : vector<4x128xf32> to vector<4x32xf32>
    %68 = arith.mulf %65, %45 : vector<4x32xf32>
    %69 = arith.mulf %64, %66 : vector<4x32xf32>
    %70 = arith.addf %68, %69 : vector<4x32xf32>
    %71 = math.tanh %70 : vector<4x32xf32>
    %72 = arith.mulf %67, %71 : vector<4x32xf32>
    %73 = arith.index_cast %c2_i32 : i32 to index
    %c0_24 = arith.constant 0 : index
    %c0_25 = arith.constant 0 : index
    %74 = vector.load %arg5[%73, %c0_24, %c0_25] : memref<8x4x32xf32, #tpu.memory_space<vmem>>, vector<1x4x32xf32>
    %75 = vector.shape_cast %74 : vector<1x4x32xf32> to vector<4x32xf32>
    %76 = vector.shape_cast %72 : vector<4x32xf32> to vector<1x4x32xf32>
    tpu.vector_store %arg5[%73, %c0_24, %c0_25], %76 {strides = array<i32>} : memref<8x4x32xf32, #tpu.memory_space<vmem>>, vector<1x4x32xf32>,
    %c3_i32 = arith.constant 3 : i32
    %77 = arith.index_cast %c3_i32 : i32 to index
    %c0_26 = arith.constant 0 : index
    %c0_27 = arith.constant 0 : index
    %78 = vector.load %arg1[%77, %c0_26, %c0_27] : memref<8x4x128xf32, #tpu.memory_space<vmem>>, vector<1x4x128xf32>
    %79 = vector.shape_cast %78 : vector<1x4x128xf32> to vector<4x128xf32>
    %c0_28 = arith.constant 0 : index
    %c0_29 = arith.constant 0 : index
    %80 = vector.load %arg2[%c0_28, %c0_29] : memref<32x128xf32, #tpu.memory_space<vmem>>, vector<32x128xf32>
    %cst_30 = arith.constant dense<0.000000e+00> : vector<4x128xf32>
    %81 = tpu.matmul %72, %80, %cst_30 {dimension_numbers = #tpu.dot_dimension_numbers<[1], [0], [0], [1], [0, 0, 1, 1], [], []>} : vector<4x32xf32>, vector<32x128xf32>, vector<4x128xf32> -> vector<4x128xf32>
    %82 = arith.addf %79, %81 : vector<4x128xf32>
    %83 = arith.negf %82 : vector<4x128xf32>
    %84 = math.exp %83 : vector<4x128xf32>
    %cst_31 = arith.constant 1.000000e+00 : f32
    %85 = vector.broadcast %cst_31 : f32 to vector<4x128xf32>
    %86 = arith.addf %85, %84 : vector<4x128xf32>
    %87 = arith.divf %85, %86 : vector<4x128xf32>
    %88 = math.tanh %82 : vector<4x128xf32>
    %89 = vector.extract_strided_slice %87 {offsets = [0, 0], sizes = [4, 32], strides = [1, 1]} : vector<4x128xf32> to vector<4x32xf32>
    %90 = vector.extract_strided_slice %87 {offsets = [0, 32], sizes = [4, 32], strides = [1, 1]} : vector<4x128xf32> to vector<4x32xf32>
    %91 = vector.extract_strided_slice %88 {offsets = [0, 64], sizes = [4, 32], strides = [1, 1]} : vector<4x128xf32> to vector<4x32xf32>
    %92 = vector.extract_strided_slice %87 {offsets = [0, 96], sizes = [4, 32], strides = [1, 1]} : vector<4x128xf32> to vector<4x32xf32>
    %93 = arith.mulf %90, %70 : vector<4x32xf32>
    %94 = arith.mulf %89, %91 : vector<4x32xf32>
    %95 = arith.addf %93, %94 : vector<4x32xf32>
    %96 = math.tanh %95 : vector<4x32xf32>
    %97 = arith.mulf %92, %96 : vector<4x32xf32>
    %98 = arith.index_cast %c3_i32 : i32 to index
    %c0_32 = arith.constant 0 : index
    %c0_33 = arith.constant 0 : index
    %99 = vector.load %arg5[%98, %c0_32, %c0_33] : memref<8x4x32xf32, #tpu.memory_space<vmem>>, vector<1x4x32xf32>
    %100 = vector.shape_cast %99 : vector<1x4x32xf32> to vector<4x32xf32>
    %101 = vector.shape_cast %97 : vector<4x32xf32> to vector<1x4x32xf32>
    tpu.vector_store %arg5[%98, %c0_32, %c0_33], %101 {strides = array<i32>} : memref<8x4x32xf32, #tpu.memory_space<vmem>>, vector<1x4x32xf32>,
    %c4_i32 = arith.constant 4 : i32
    %102 = arith.index_cast %c4_i32 : i32 to index
    %c0_34 = arith.constant 0 : index
    %c0_35 = arith.constant 0 : index
    %103 = vector.load %arg1[%102, %c0_34, %c0_35] : memref<8x4x128xf32, #tpu.memory_space<vmem>>, vector<1x4x128xf32>
    %104 = vector.shape_cast %103 : vector<1x4x128xf32> to vector<4x128xf32>
    %c0_36 = arith.constant 0 : index
    %c0_37 = arith.constant 0 : index
    %105 = vector.load %arg2[%c0_36, %c0_37] : memref<32x128xf32, #tpu.memory_space<vmem>>, vector<32x128xf32>
    %cst_38 = arith.constant dense<0.000000e+00> : vector<4x128xf32>
    %106 = tpu.matmul %97, %105, %cst_38 {dimension_numbers = #tpu.dot_dimension_numbers<[1], [0], [0], [1], [0, 0, 1, 1], [], []>} : vector<4x32xf32>, vector<32x128xf32>, vector<4x128xf32> -> vector<4x128xf32>
    %107 = arith.addf %104, %106 : vector<4x128xf32>
    %108 = arith.negf %107 : vector<4x128xf32>
    %109 = math.exp %108 : vector<4x128xf32>
    %cst_39 = arith.constant 1.000000e+00 : f32
    %110 = vector.broadcast %cst_39 : f32 to vector<4x128xf32>
    %111 = arith.addf %110, %109 : vector<4x128xf32>
    %112 = arith.divf %110, %111 : vector<4x128xf32>
    %113 = math.tanh %107 : vector<4x128xf32>
    %114 = vector.extract_strided_slice %112 {offsets = [0, 0], sizes = [4, 32], strides = [1, 1]} : vector<4x128xf32> to vector<4x32xf32>
    %115 = vector.extract_strided_slice %112 {offsets = [0, 32], sizes = [4, 32], strides = [1, 1]} : vector<4x128xf32> to vector<4x32xf32>
    %116 = vector.extract_strided_slice %113 {offsets = [0, 64], sizes = [4, 32], strides = [1, 1]} : vector<4x128xf32> to vector<4x32xf32>
    %117 = vector.extract_strided_slice %112 {offsets = [0, 96], sizes = [4, 32], strides = [1, 1]} : vector<4x128xf32> to vector<4x32xf32>
    %118 = arith.mulf %115, %95 : vector<4x32xf32>
    %119 = arith.mulf %114, %116 : vector<4x32xf32>
    %120 = arith.addf %118, %119 : vector<4x32xf32>
    %121 = math.tanh %120 : vector<4x32xf32>
    %122 = arith.mulf %117, %121 : vector<4x32xf32>
    %123 = arith.index_cast %c4_i32 : i32 to index
    %c0_40 = arith.constant 0 : index
    %c0_41 = arith.constant 0 : index
    %124 = vector.load %arg5[%123, %c0_40, %c0_41] : memref<8x4x32xf32, #tpu.memory_space<vmem>>, vector<1x4x32xf32>
    %125 = vector.shape_cast %124 : vector<1x4x32xf32> to vector<4x32xf32>
    %126 = vector.shape_cast %122 : vector<4x32xf32> to vector<1x4x32xf32>
    tpu.vector_store %arg5[%123, %c0_40, %c0_41], %126 {strides = array<i32>} : memref<8x4x32xf32, #tpu.memory_space<vmem>>, vector<1x4x32xf32>,
    %c5_i32 = arith.constant 5 : i32
    %127 = arith.index_cast %c5_i32 : i32 to index
    %c0_42 = arith.constant 0 : index
    %c0_43 = arith.constant 0 : index
    %128 = vector.load %arg1[%127, %c0_42, %c0_43] : memref<8x4x128xf32, #tpu.memory_space<vmem>>, vector<1x4x128xf32>
    %129 = vector.shape_cast %128 : vector<1x4x128xf32> to vector<4x128xf32>
    %c0_44 = arith.constant 0 : index
    %c0_45 = arith.constant 0 : index
    %130 = vector.load %arg2[%c0_44, %c0_45] : memref<32x128xf32, #tpu.memory_space<vmem>>, vector<32x128xf32>
    %cst_46 = arith.constant dense<0.000000e+00> : vector<4x128xf32>
    %131 = tpu.matmul %122, %130, %cst_46 {dimension_numbers = #tpu.dot_dimension_numbers<[1], [0], [0], [1], [0, 0, 1, 1], [], []>} : vector<4x32xf32>, vector<32x128xf32>, vector<4x128xf32> -> vector<4x128xf32>
    %132 = arith.addf %129, %131 : vector<4x128xf32>
    %133 = arith.negf %132 : vector<4x128xf32>
    %134 = math.exp %133 : vector<4x128xf32>
    %cst_47 = arith.constant 1.000000e+00 : f32
    %135 = vector.broadcast %cst_47 : f32 to vector<4x128xf32>
    %136 = arith.addf %135, %134 : vector<4x128xf32>
    %137 = arith.divf %135, %136 : vector<4x128xf32>
    %138 = math.tanh %132 : vector<4x128xf32>
    %139 = vector.extract_strided_slice %137 {offsets = [0, 0], sizes = [4, 32], strides = [1, 1]} : vector<4x128xf32> to vector<4x32xf32>
    %140 = vector.extract_strided_slice %137 {offsets = [0, 32], sizes = [4, 32], strides = [1, 1]} : vector<4x128xf32> to vector<4x32xf32>
    %141 = vector.extract_strided_slice %138 {offsets = [0, 64], sizes = [4, 32], strides = [1, 1]} : vector<4x128xf32> to vector<4x32xf32>
    %142 = vector.extract_strided_slice %137 {offsets = [0, 96], sizes = [4, 32], strides = [1, 1]} : vector<4x128xf32> to vector<4x32xf32>
    %143 = arith.mulf %140, %120 : vector<4x32xf32>
    %144 = arith.mulf %139, %141 : vector<4x32xf32>
    %145 = arith.addf %143, %144 : vector<4x32xf32>
    %146 = math.tanh %145 : vector<4x32xf32>
    %147 = arith.mulf %142, %146 : vector<4x32xf32>
    %148 = arith.index_cast %c5_i32 : i32 to index
    %c0_48 = arith.constant 0 : index
    %c0_49 = arith.constant 0 : index
    %149 = vector.load %arg5[%148, %c0_48, %c0_49] : memref<8x4x32xf32, #tpu.memory_space<vmem>>, vector<1x4x32xf32>
    %150 = vector.shape_cast %149 : vector<1x4x32xf32> to vector<4x32xf32>
    %151 = vector.shape_cast %147 : vector<4x32xf32> to vector<1x4x32xf32>
    tpu.vector_store %arg5[%148, %c0_48, %c0_49], %151 {strides = array<i32>} : memref<8x4x32xf32, #tpu.memory_space<vmem>>, vector<1x4x32xf32>,
    %c6_i32 = arith.constant 6 : i32
    %152 = arith.index_cast %c6_i32 : i32 to index
    %c0_50 = arith.constant 0 : index
    %c0_51 = arith.constant 0 : index
    %153 = vector.load %arg1[%152, %c0_50, %c0_51] : memref<8x4x128xf32, #tpu.memory_space<vmem>>, vector<1x4x128xf32>
    %154 = vector.shape_cast %153 : vector<1x4x128xf32> to vector<4x128xf32>
    %c0_52 = arith.constant 0 : index
    %c0_53 = arith.constant 0 : index
    %155 = vector.load %arg2[%c0_52, %c0_53] : memref<32x128xf32, #tpu.memory_space<vmem>>, vector<32x128xf32>
    %cst_54 = arith.constant dense<0.000000e+00> : vector<4x128xf32>
    %156 = tpu.matmul %147, %155, %cst_54 {dimension_numbers = #tpu.dot_dimension_numbers<[1], [0], [0], [1], [0, 0, 1, 1], [], []>} : vector<4x32xf32>, vector<32x128xf32>, vector<4x128xf32> -> vector<4x128xf32>
    %157 = arith.addf %154, %156 : vector<4x128xf32>
    %158 = arith.negf %157 : vector<4x128xf32>
    %159 = math.exp %158 : vector<4x128xf32>
    %cst_55 = arith.constant 1.000000e+00 : f32
    %160 = vector.broadcast %cst_55 : f32 to vector<4x128xf32>
    %161 = arith.addf %160, %159 : vector<4x128xf32>
    %162 = arith.divf %160, %161 : vector<4x128xf32>
    %163 = math.tanh %157 : vector<4x128xf32>
    %164 = vector.extract_strided_slice %162 {offsets = [0, 0], sizes = [4, 32], strides = [1, 1]} : vector<4x128xf32> to vector<4x32xf32>
    %165 = vector.extract_strided_slice %162 {offsets = [0, 32], sizes = [4, 32], strides = [1, 1]} : vector<4x128xf32> to vector<4x32xf32>
    %166 = vector.extract_strided_slice %163 {offsets = [0, 64], sizes = [4, 32], strides = [1, 1]} : vector<4x128xf32> to vector<4x32xf32>
    %167 = vector.extract_strided_slice %162 {offsets = [0, 96], sizes = [4, 32], strides = [1, 1]} : vector<4x128xf32> to vector<4x32xf32>
    %168 = arith.mulf %165, %145 : vector<4x32xf32>
    %169 = arith.mulf %164, %166 : vector<4x32xf32>
    %170 = arith.addf %168, %169 : vector<4x32xf32>
    %171 = math.tanh %170 : vector<4x32xf32>
    %172 = arith.mulf %167, %171 : vector<4x32xf32>
    %173 = arith.index_cast %c6_i32 : i32 to index
    %c0_56 = arith.constant 0 : index
    %c0_57 = arith.constant 0 : index
    %174 = vector.load %arg5[%173, %c0_56, %c0_57] : memref<8x4x32xf32, #tpu.memory_space<vmem>>, vector<1x4x32xf32>
    %175 = vector.shape_cast %174 : vector<1x4x32xf32> to vector<4x32xf32>
    %176 = vector.shape_cast %172 : vector<4x32xf32> to vector<1x4x32xf32>
    tpu.vector_store %arg5[%173, %c0_56, %c0_57], %176 {strides = array<i32>} : memref<8x4x32xf32, #tpu.memory_space<vmem>>, vector<1x4x32xf32>,
    %c7_i32 = arith.constant 7 : i32
    %177 = arith.index_cast %c7_i32 : i32 to index
    %c0_58 = arith.constant 0 : index
    %c0_59 = arith.constant 0 : index
    %178 = vector.load %arg1[%177, %c0_58, %c0_59] : memref<8x4x128xf32, #tpu.memory_space<vmem>>, vector<1x4x128xf32>
    %179 = vector.shape_cast %178 : vector<1x4x128xf32> to vector<4x128xf32>
    %c0_60 = arith.constant 0 : index
    %c0_61 = arith.constant 0 : index
    %180 = vector.load %arg2[%c0_60, %c0_61] : memref<32x128xf32, #tpu.memory_space<vmem>>, vector<32x128xf32>
    %cst_62 = arith.constant dense<0.000000e+00> : vector<4x128xf32>
    %181 = tpu.matmul %172, %180, %cst_62 {dimension_numbers = #tpu.dot_dimension_numbers<[1], [0], [0], [1], [0, 0, 1, 1], [], []>} : vector<4x32xf32>, vector<32x128xf32>, vector<4x128xf32> -> vector<4x128xf32>
    %182 = arith.addf %179, %181 : vector<4x128xf32>
    %183 = arith.negf %182 : vector<4x128xf32>
    %184 = math.exp %183 : vector<4x128xf32>
    %cst_63 = arith.constant 1.000000e+00 : f32
    %185 = vector.broadcast %cst_63 : f32 to vector<4x128xf32>
    %186 = arith.addf %185, %184 : vector<4x128xf32>
    %187 = arith.divf %185, %186 : vector<4x128xf32>
    %188 = math.tanh %182 : vector<4x128xf32>
    %189 = vector.extract_strided_slice %187 {offsets = [0, 0], sizes = [4, 32], strides = [1, 1]} : vector<4x128xf32> to vector<4x32xf32>
    %190 = vector.extract_strided_slice %187 {offsets = [0, 32], sizes = [4, 32], strides = [1, 1]} : vector<4x128xf32> to vector<4x32xf32>
    %191 = vector.extract_strided_slice %188 {offsets = [0, 64], sizes = [4, 32], strides = [1, 1]} : vector<4x128xf32> to vector<4x32xf32>
    %192 = vector.extract_strided_slice %187 {offsets = [0, 96], sizes = [4, 32], strides = [1, 1]} : vector<4x128xf32> to vector<4x32xf32>
    %193 = arith.mulf %190, %170 : vector<4x32xf32>
    %194 = arith.mulf %189, %191 : vector<4x32xf32>
    %195 = arith.addf %193, %194 : vector<4x32xf32>
    %196 = math.tanh %195 : vector<4x32xf32>
    %197 = arith.mulf %192, %196 : vector<4x32xf32>
    %198 = arith.index_cast %c7_i32 : i32 to index
    %c0_64 = arith.constant 0 : index
    %c0_65 = arith.constant 0 : index
    %199 = vector.load %arg5[%198, %c0_64, %c0_65] : memref<8x4x32xf32, #tpu.memory_space<vmem>>, vector<1x4x32xf32>
    %200 = vector.shape_cast %199 : vector<1x4x32xf32> to vector<4x32xf32>
    %201 = vector.shape_cast %197 : vector<4x32xf32> to vector<1x4x32xf32>
    tpu.vector_store %arg5[%198, %c0_64, %c0_65], %201 {strides = array<i32>} : memref<8x4x32xf32, #tpu.memory_space<vmem>>, vector<1x4x32xf32>,
    %c8_i32 = arith.constant 8 : i32
    %c0_66 = arith.constant 0 : index
    %c0_67 = arith.constant 0 : index
    %202 = vector.load %arg6[%c0_66, %c0_67] : memref<4x32xf32, #tpu.memory_space<vmem>>, vector<4x32xf32>
    tpu.vector_store %arg6[%c0_66, %c0_67], %197 {strides = array<i32>} : memref<4x32xf32, #tpu.memory_space<vmem>>, vector<4x32xf32>,
    %c0_68 = arith.constant 0 : index
    %c0_69 = arith.constant 0 : index
    %203 = vector.load %arg7[%c0_68, %c0_69] : memref<4x32xf32, #tpu.memory_space<vmem>>, vector<4x32xf32>
    tpu.vector_store %arg7[%c0_68, %c0_69], %195 {strides = array<i32>} : memref<4x32xf32, #tpu.memory_space<vmem>>, vector<4x32xf32>,
    return
  }
  func.func @transform_0(%arg0: i32) -> (i32, i32, i32) {
    %c0_i32 = arith.constant 0 : i32
    %c0_i32_0 = arith.constant 0 : i32
    %c0_i32_1 = arith.constant 0 : i32
    %c0_i32_2 = arith.constant 0 : i32
    return %c0_i32, %c0_i32_0, %c0_i32_1 : i32, i32, i32
  }
  func.func @transform_1(%arg0: i32) -> (i32, i32) {
    %c0_i32 = arith.constant 0 : i32
    %c0_i32_0 = arith.constant 0 : i32
    %c0_i32_1 = arith.constant 0 : i32
    return %c0_i32, %c0_i32_0 : i32, i32
  }
  func.func @transform_2(%arg0: i32) -> (i32, i32) {
    %c0_i32 = arith.constant 0 : i32
    %c0_i32_0 = arith.constant 0 : i32
    %c0_i32_1 = arith.constant 0 : i32
    return %c0_i32, %c0_i32_0 : i32, i32
  }
  func.func @transform_3(%arg0: i32) -> (i32, i32) {
    %c0_i32 = arith.constant 0 : i32
    %c0_i32_0 = arith.constant 0 : i32
    %c0_i32_1 = arith.constant 0 : i32
    return %c0_i32, %c0_i32_0 : i32, i32
  }
  func.func @transform_4(%arg0: i32) -> (i32, i32, i32) {
    %c0_i32 = arith.constant 0 : i32
    %c0_i32_0 = arith.constant 0 : i32
    %c0_i32_1 = arith.constant 0 : i32
    %c0_i32_2 = arith.constant 0 : i32
    return %c0_i32, %c0_i32_0, %c0_i32_1 : i32, i32, i32
  }
  func.func @transform_5(%arg0: i32) -> (i32, i32) {
    %c0_i32 = arith.constant 0 : i32
    %c0_i32_0 = arith.constant 0 : i32
    %c0_i32_1 = arith.constant 0 : i32
    return %c0_i32, %c0_i32_0 : i32, i32
  }
  func.func @transform_6(%arg0: i32) -> (i32, i32) {
    %c0_i32 = arith.constant 0 : i32
    %c0_i32_0 = arith.constant 0 : i32
    %c0_i32_1 = arith.constant 0 : i32
    return %c0_i32, %c0_i32_0 : i32, i32
  }
}

</mosaic_0001>

<llo_original>
// kernel: char_decoder_forward.1
$region0: #{char_decoder_forward.1}
  #allocation0 [shape = 'u32[]', space=smem, size = 0x4, offset = 0x4, fixed_abs, tag = 'smem constant byte address 0x4 - core index']
  #allocation1 [shape = 'u32[144,128]{1,0:T(1,128)}', space=vmem, size = 0x12000, scoped, tag = 'internal scratch']
  %s0 = inlined_call_operand.vmem [shape: f32[8,4,128], index: 0, kind: input, shape index: {}]
  %s1 = inlined_call_operand.vmem [shape: f32[32,128], index: 1, kind: input, shape index: {}]
  %s2 = inlined_call_operand.vmem [shape: f32[4,32], index: 2, kind: input, shape index: {}]
  %s3 = inlined_call_operand.vmem [shape: f32[4,32], index: 3, kind: input, shape index: {}]
  %s4 = inlined_call_operand.vmem [shape: f32[8,4,32], index: 4, kind: output, shape index: {0}]
  %s5 = inlined_call_operand.hbm [shape: f32[4,32], index: 5, kind: output, shape index: {1}]
  %s6 = inlined_call_operand.hbm [shape: f32[4,32], index: 6, kind: output, shape index: {2}]
  %7 = xla_tuple %s4, %s5, %s6
  %s8 = sld [smem:[#allocation0]]
  $region42: #{char_decoder_forward.1} parent=0
    _
  %s10 = ssub.s32 1, %s8
  %s11 = scalar_select 0, %s10, %s8
  $region1: #{char_decoder_forward.1} parent=0
    #allocation2 [shape = 'u8[2048]{0}', space=vmem, size = 0x800, scoped, tag = 'output window, operand 1, single buffered']
    #allocation3 [shape = 's32[1]{0}', space=sflag, size = 0x4, scoped, tag = 'scoped memory for char_decoder_forward.1']
    #allocation4 [shape = 'u8[2048]{0}', space=vmem, size = 0x800, scoped, tag = 'output window, operand 2, single buffered']
    #allocation5 [shape = 's32[1]{0}', space=sflag, size = 0x4, scoped, tag = 'scoped memory for char_decoder_forward.1']
    %12 = vsyncpa [#allocation3], 0
    %13 = vsyncpa [#allocation5], 0
    // Predicated region
    $region2: #{char_decoder_forward.1} parent=1 // pred_check
      _
    $region3: #{char_decoder_forward.1} parent=1 // pred_check_branch
      %15 = sbr.rel (0) target = $region5
    $region4: #{char_decoder_forward.1} parent=1 // pred_region
      _
    $region5: #{char_decoder_forward.1} parent=1 // pred_fallthru
      _
    // Predicated region
    $region6: #{char_decoder_forward.1} parent=1 // pred_check
      _
    $region7: #{char_decoder_forward.1} parent=1 // pred_check_branch
      %17 = sbr.rel (0) target = $region9
    $region8: #{char_decoder_forward.1} parent=1 // pred_region
      _
    $region9: #{char_decoder_forward.1} parent=1 // pred_fallthru
      _
    // Predicated region
    $region10: #{char_decoder_forward.1} parent=1 // pred_check
      _
    $region11: #{char_decoder_forward.1} parent=1 // pred_check_branch
      %19 = sbr.rel (0) target = $region13
    $region12: #{char_decoder_forward.1} parent=1 // pred_region
      _
    $region13: #{char_decoder_forward.1} parent=1 // pred_fallthru
      _
    // Predicated region
    $region14: #{char_decoder_forward.1} parent=1 // pred_check
      _
    $region15: #{char_decoder_forward.1} parent=1 // pred_check_branch
      %21 = sbr.rel (0) target = $region17
    $region16: #{char_decoder_forward.1} parent=1 // pred_region
      _
    $region17: #{char_decoder_forward.1} parent=1 // pred_fallthru
      _
    %v22 = vld [vmem:[%s2] sm:$0xf]
    %v23 = vld [vmem:[%s3] sm:$0xf]
    %v24 = vld [vmem:[%s0] sm:$0xf]
    %v25 = vld [vmem:[%s1] sm:$0xff]
    %v26 = vld [vmem:[%s1 + $0x8] sm:$0xff]
    %v27 = vld [vmem:[%s1 + $0x10] sm:$0xff]
    %v28 = vld [vmem:[%s1 + $0x18] sm:$0xff]
    %vm29 = vcmask 261120
    %v31 = vsel %vm29, %v22, 0
    %33 = vmatprep.subr.mxu0 0.0
    %34 = vmatpush1.msra.mxu0 0.0
    %35 = vmatprep.subr.mxu0 0.0
    %36 = vmatpush1.msra.mxu0 0.0
    %37 = vmatprep.subr.mxu0 0.0
    %38 = vmatpush1.msra.mxu0 0.0
    %39 = vmatprep.subr.mxu0 0.0
    %40 = vmatpush1.msra.mxu0 0.0
    %41 = vmatprep.subr.mxu0 0.0
    %42 = vmatpush1.msra.mxu0 0.0
    %43 = vmatprep.subr.mxu0 0.0
    %44 = vmatpush1.msra.mxu0 0.0
    %45 = vmatprep.subr.mxu0 0.0
    %46 = vmatpush1.msra.mxu0 0.0
    %47 = vmatprep.subr.mxu0 0.0
    %48 = vmatpush1.msra.mxu0 0.0
    %49 = vmatprep.subr.mxu0 0.0
    %50 = vmatpush1.msra.mxu0 0.0
    %51 = vmatprep.subr.mxu0 0.0
    %52 = vmatpush1.msra.mxu0 0.0
    %53 = vmatprep.subr.mxu0 0.0
    %54 = vmatpush1.msra.mxu0 0.0
    %55 = vmatprep.subr.mxu0 0.0
    %56 = vmatpush1.msra.mxu0 0.0
    %57 = vmatprep.subr.mxu0 0.0
    %58 = vmatpush1.msra.mxu0 %v28
    %59 = vmatprep.subr.mxu0 0.0
    %60 = vmatpush1.msra.mxu0 %v27
    %61 = vmatprep.subr.mxu0 0.0
    %62 = vmatpush1.msra.mxu0 %v26
    %63 = vmatprep.subr.mxu0 0.0
    %64 = vmatpush1.msra.mxu0 %v25
    %65 = vmatprep.subr.mxu0 0.0
    %66 = vmatpush2.msra.mxu0 0.0
    %67 = vmatprep.subr.mxu0 0.0
    %68 = vmatpush2.msra.mxu0 0.0
    %69 = vmatprep.subr.mxu0 0.0
    %70 = vmatpush2.msra.mxu0 0.0
    %71 = vmatprep.subr.mxu0 0.0
    %72 = vmatpush2.msra.mxu0 0.0
    %73 = vmatprep.subr.mxu0 0.0
    %74 = vmatpush2.msra.mxu0 0.0
    %75 = vmatprep.subr.mxu0 0.0
    %76 = vmatpush2.msra.mxu0 0.0
    %77 = vmatprep.subr.mxu0 0.0
    %78 = vmatpush2.msra.mxu0 0.0
    %79 = vmatprep.subr.mxu0 0.0
    %80 = vmatpush2.msra.mxu0 0.0
    %81 = vmatprep.subr.mxu0 0.0
    %82 = vmatpush2.msra.mxu0 0.0
    %83 = vmatprep.subr.mxu0 0.0
    %84 = vmatpush2.msra.mxu0 0.0
    %85 = vmatprep.subr.mxu0 0.0
    %86 = vmatpush2.msra.mxu0 0.0
    %87 = vmatprep.subr.mxu0 0.0
    %88 = vmatpush2.msra.mxu0 0.0
    %89 = vmatprep.subr.mxu0 0.0
    %90 = vmatpush2.msra.mxu0 0.0
    %91 = vmatprep.subr.mxu0 0.0
    %92 = vmatpush2.msra.mxu0 0.0
    %93 = vmatprep.subr.mxu0 0.0
    %94 = vmatpush2.msra.mxu0 0.0
    %95 = vmatprep.subr.mxu0 0.0
    %96 = vmatpush2.msra.mxu0 0.0
    %97 = vmatprep.mubr.f32.mxu0 0.0
    %98 = vmatmul.mubr.f32.gmra.mxu0 %v31
    %v99 = vpop.f32.mrf.mxu0
    %v100 = vadd.f32 0.0, %v99
    %v101 = vpop.f32.mrf.mxu0
    %102 = vdwg.mxu0
    %v103 = vadd.f32 %v24, %v100
    %v104 = vxor.u32 %v103, 2147483648
    %v105 = vmul.f32 %v104, 1.442695
    %v106 = vpow.pop %v105
    %v107 = vadd.f32 %v106, 1.0
    %v108 = vrcp.pop %v107
    %v109 = vmul.f32 1.0, %v108
    %v110 = vtanh.pop %v103
    %112 = vrot.lane.b32.xlu0 %v23, 32
    %v113 = vpop.permute.xlu0 %112
    %v115 = vmul.f32 %v109, %v113
    %117 = vrot.lane.b32.xlu0 %v110, 64
    %v118 = vpop.permute.xlu0 %117
    %v120 = vmul.f32 %v109, %v118
    %122 = vrot.lane.b32.xlu0 %v120, 32
    %v123 = vpop.permute.xlu0 %122
    %v125 = vadd.f32 %v115, %v123
    %v126 = vtanh.pop %v125
    %128 = vrot.lane.b32.xlu0 %v126, 64
    %v129 = vpop.permute.xlu0 %128
    %v131 = vmul.f32 %v109, %v129
    %133 = vrot.lane.b32.xlu0 %v131, 32
    %v134 = vpop.permute.xlu0 %133
    %vm136 = vcmask 257024
    %137 = vst.msk [vmem:[%s4] sm:$0xf] %vm136, %v134
    %s138 = scalar_lea.vmem %s0, 4
    %v139 = vld [vmem:[%s138] sm:$0xf]
    %v140 = vld [vmem:[%s1] sm:$0xff]
    %v141 = vld [vmem:[%s1 + $0x8] sm:$0xff]
    %v142 = vld [vmem:[%s1 + $0x10] sm:$0xff]
    %v143 = vld [vmem:[%s1 + $0x18] sm:$0xff]
    %v144 = vsel %vm29, %v134, 0
    %146 = vmatprep.subr.mxu0 0.0
    %147 = vmatpush1.msra.mxu0 0.0
    %148 = vmatprep.subr.mxu0 0.0
    %149 = vmatpush1.msra.mxu0 0.0
    %150 = vmatprep.subr.mxu0 0.0
    %151 = vmatpush1.msra.mxu0 0.0
    %152 = vmatprep.subr.mxu0 0.0
    %153 = vmatpush1.msra.mxu0 0.0
    %154 = vmatprep.subr.mxu0 0.0
    %155 = vmatpush1.msra.mxu0 0.0
    %156 = vmatprep.subr.mxu0 0.0
    %157 = vmatpush1.msra.mxu0 0.0
    %158 = vmatprep.subr.mxu0 0.0
    %159 = vmatpush1.msra.mxu0 0.0
    %160 = vmatprep.subr.mxu0 0.0
    %161 = vmatpush1.msra.mxu0 0.0
    %162 = vmatprep.subr.mxu0 0.0
    %163 = vmatpush1.msra.mxu0 0.0
    %164 = vmatprep.subr.mxu0 0.0
    %165 = vmatpush1.msra.mxu0 0.0
    %166 = vmatprep.subr.mxu0 0.0
    %167 = vmatpush1.msra.mxu0 0.0
    %168 = vmatprep.subr.mxu0 0.0
    %169 = vmatpush1.msra.mxu0 0.0
    %170 = vmatprep.subr.mxu0 0.0
    %171 = vmatpush1.msra.mxu0 %v143
    %172 = vmatprep.subr.mxu0 0.0
    %173 = vmatpush1.msra.mxu0 %v142
    %174 = vmatprep.subr.mxu0 0.0
    %175 = vmatpush1.msra.mxu0 %v141
    %176 = vmatprep.subr.mxu0 0.0
    %177 = vmatpush1.msra.mxu0 %v140
    %178 = vmatprep.subr.mxu0 0.0
    %179 = vmatpush2.msra.mxu0 0.0
    %180 = vmatprep.subr.mxu0 0.0
    %181 = vmatpush2.msra.mxu0 0.0
    %182 = vmatprep.subr.mxu0 0.0
    %183 = vmatpush2.msra.mxu0 0.0
    %184 = vmatprep.subr.mxu0 0.0
    %185 = vmatpush2.msra.mxu0 0.0
    %186 = vmatprep.subr.mxu0 0.0
    %187 = vmatpush2.msra.mxu0 0.0
    %188 = vmatprep.subr.mxu0 0.0
    %189 = vmatpush2.msra.mxu0 0.0
    %190 = vmatprep.subr.mxu0 0.0
    %191 = vmatpush2.msra.mxu0 0.0
    %192 = vmatprep.subr.mxu0 0.0
    %193 = vmatpush2.msra.mxu0 0.0
    %194 = vmatprep.subr.mxu0 0.0
    %195 = vmatpush2.msra.mxu0 0.0
    %196 = vmatprep.subr.mxu0 0.0
    %197 = vmatpush2.msra.mxu0 0.0
    %198 = vmatprep.subr.mxu0 0.0
    %199 = vmatpush2.msra.mxu0 0.0
    %200 = vmatprep.subr.mxu0 0.0
    %201 = vmatpush2.msra.mxu0 0.0
    %202 = vmatprep.subr.mxu0 0.0
    %203 = vmatpush2.msra.mxu0 0.0
    %204 = vmatprep.subr.mxu0 0.0
    %205 = vmatpush2.msra.mxu0 0.0
    %206 = vmatprep.subr.mxu0 0.0
    %207 = vmatpush2.msra.mxu0 0.0
    %208 = vmatprep.subr.mxu0 0.0
    %209 = vmatpush2.msra.mxu0 0.0
    %210 = vmatprep.mubr.f32.mxu0 0.0
    %211 = vmatmul.mubr.f32.gmra.mxu0 %v144
    %v212 = vpop.f32.mrf.mxu0
    %v213 = vadd.f32 0.0, %v212
    %v214 = vpop.f32.mrf.mxu0
    %215 = vdwg.mxu0
    %v216 = vadd.f32 %v139, %v213
    %v217 = vxor.u32 %v216, 2147483648
    %v218 = vmul.f32 %v217, 1.442695
    %v219 = vpow.pop %v218
    %v220 = vadd.f32 %v219, 1.0
    %v221 = vrcp.pop %v220
    %v222 = vmul.f32 1.0, %v221
    %v223 = vtanh.pop %v216
    %v224 = vmul.f32 %v222, %v125
    %226 = vrot.lane.b32.xlu0 %v223, 64
    %v227 = vpop.permute.xlu0 %226
    %v229 = vmul.f32 %v222, %v227
    %231 = vrot.lane.b32.xlu0 %v229, 32
    %v232 = vpop.permute.xlu0 %231
    %v234 = vadd.f32 %v224, %v232
    %v235 = vtanh.pop %v234
    %237 = vrot.lane.b32.xlu0 %v235, 64
    %v238 = vpop.permute.xlu0 %237
    %v240 = vmul.f32 %v222, %v238
    %242 = vrot.lane.b32.xlu0 %v240, 32
    %v243 = vpop.permute.xlu0 %242
    %s245 = scalar_lea.vmem %s4, 4
    %246 = vst.msk [vmem:[%s245] sm:$0xf] %vm136, %v243
    %s247 = scalar_lea.vmem %s0, 8
    %v248 = vld [vmem:[%s247] sm:$0xf]
    %v249 = vld [vmem:[%s1] sm:$0xff]
    %v250 = vld [vmem:[%s1 + $0x8] sm:$0xff]
    %v251 = vld [vmem:[%s1 + $0x10] sm:$0xff]
    %v252 = vld [vmem:[%s1 + $0x18] sm:$0xff]
    %v253 = vsel %vm29, %v243, 0
    %255 = vmatprep.subr.mxu0 0.0
    %256 = vmatpush1.msra.mxu0 0.0
    %257 = vmatprep.subr.mxu0 0.0
    %258 = vmatpush1.msra.mxu0 0.0
    %259 = vmatprep.subr.mxu0 0.0
    %260 = vmatpush1.msra.mxu0 0.0
    %261 = vmatprep.subr.mxu0 0.0
    %262 = vmatpush1.msra.mxu0 0.0
    %263 = vmatprep.subr.mxu0 0.0
    %264 = vmatpush1.msra.mxu0 0.0
    %265 = vmatprep.subr.mxu0 0.0
    %266 = vmatpush1.msra.mxu0 0.0
    %267 = vmatprep.subr.mxu0 0.0
    %268 = vmatpush1.msra.mxu0 0.0
    %269 = vmatprep.subr.mxu0 0.0
    %270 = vmatpush1.msra.mxu0 0.0
    %271 = vmatprep.subr.mxu0 0.0
    %272 = vmatpush1.msra.mxu0 0.0
    %273 = vmatprep.subr.mxu0 0.0
    %274 = vmatpush1.msra.mxu0 0.0
    %275 = vmatprep.subr.mxu0 0.0
    %276 = vmatpush1.msra.mxu0 0.0
    %277 = vmatprep.subr.mxu0 0.0
    %278 = vmatpush1.msra.mxu0 0.0
    %279 = vmatprep.subr.mxu0 0.0
    %280 = vmatpush1.msra.mxu0 %v252
    %281 = vmatprep.subr.mxu0 0.0
    %282 = vmatpush1.msra.mxu0 %v251
    %283 = vmatprep.subr.mxu0 0.0
    %284 = vmatpush1.msra.mxu0 %v250
    %285 = vmatprep.subr.mxu0 0.0
    %286 = vmatpush1.msra.mxu0 %v249
    %287 = vmatprep.subr.mxu0 0.0
    %288 = vmatpush2.msra.mxu0 0.0
    %289 = vmatprep.subr.mxu0 0.0
    %290 = vmatpush2.msra.mxu0 0.0
    %291 = vmatprep.subr.mxu0 0.0
    %292 = vmatpush2.msra.mxu0 0.0
    %293 = vmatprep.subr.mxu0 0.0
    %294 = vmatpush2.msra.mxu0 0.0
    %295 = vmatprep.subr.mxu0 0.0
    %296 = vmatpush2.msra.mxu0 0.0
    %297 = vmatprep.subr.mxu0 0.0
    %298 = vmatpush2.msra.mxu0 0.0
    %299 = vmatprep.subr.mxu0 0.0
    %300 = vmatpush2.msra.mxu0 0.0
    %301 = vmatprep.subr.mxu0 0.0
    %302 = vmatpush2.msra.mxu0 0.0
    %303 = vmatprep.subr.mxu0 0.0
    %304 = vmatpush2.msra.mxu0 0.0
    %305 = vmatprep.subr.mxu0 0.0
    %306 = vmatpush2.msra.mxu0 0.0
    %307 = vmatprep.subr.mxu0 0.0
    %308 = vmatpush2.msra.mxu0 0.0
    %309 = vmatprep.subr.mxu0 0.0
    %310 = vmatpush2.msra.mxu0 0.0
    %311 = vmatprep.subr.mxu0 0.0
    %312 = vmatpush2.msra.mxu0 0.0
    %313 = vmatprep.subr.mxu0 0.0
    %314 = vmatpush2.msra.mxu0 0.0
    %315 = vmatprep.subr.mxu0 0.0
    %316 = vmatpush2.msra.mxu0 0.0
    %317 = vmatprep.subr.mxu0 0.0
    %318 = vmatpush2.msra.mxu0 0.0
    %319 = vmatprep.mubr.f32.mxu0 0.0
    %320 = vmatmul.mubr.f32.gmra.mxu0 %v253
    %v321 = vpop.f32.mrf.mxu0
    %v322 = vadd.f32 0.0, %v321
    %v323 = vpop.f32.mrf.mxu0
    %324 = vdwg.mxu0
    %v325 = vadd.f32 %v248, %v322
    %v326 = vxor.u32 %v325, 2147483648
    %v327 = vmul.f32 %v326, 1.442695
    %v328 = vpow.pop %v327
    %v329 = vadd.f32 %v328, 1.0
    %v330 = vrcp.pop %v329
    %v331 = vmul.f32 1.0, %v330
    %v332 = vtanh.pop %v325
    %v333 = vmul.f32 %v331, %v234
    %335 = vrot.lane.b32.xlu0 %v332, 64
    %v336 = vpop.permute.xlu0 %335
    %v338 = vmul.f32 %v331, %v336
    %340 = vrot.lane.b32.xlu0 %v338, 32
    %v341 = vpop.permute.xlu0 %340
    %v343 = vadd.f32 %v333, %v341
    %v344 = vtanh.pop %v343
    %346 = vrot.lane.b32.xlu0 %v344, 64
    %v347 = vpop.permute.xlu0 %346
    %v349 = vmul.f32 %v331, %v347
    %351 = vrot.lane.b32.xlu0 %v349, 32
    %v352 = vpop.permute.xlu0 %351
    %s354 = scalar_lea.vmem %s4, 8
    %355 = vst.msk [vmem:[%s354] sm:$0xf] %vm136, %v352
    %s356 = scalar_lea.vmem %s0, 12
    %v357 = vld [vmem:[%s356] sm:$0xf]
    %v358 = vld [vmem:[%s1] sm:$0xff]
    %v359 = vld [vmem:[%s1 + $0x8] sm:$0xff]
    %v360 = vld [vmem:[%s1 + $0x10] sm:$0xff]
    %v361 = vld [vmem:[%s1 + $0x18] sm:$0xff]
    %v362 = vsel %vm29, %v352, 0
    %364 = vmatprep.subr.mxu0 0.0
    %365 = vmatpush1.msra.mxu0 0.0
    %366 = vmatprep.subr.mxu0 0.0
    %367 = vmatpush1.msra.mxu0 0.0
    %368 = vmatprep.subr.mxu0 0.0
    %369 = vmatpush1.msra.mxu0 0.0
    %370 = vmatprep.subr.mxu0 0.0
    %371 = vmatpush1.msra.mxu0 0.0
    %372 = vmatprep.subr.mxu0 0.0
    %373 = vmatpush1.msra.mxu0 0.0
    %374 = vmatprep.subr.mxu0 0.0
    %375 = vmatpush1.msra.mxu0 0.0
    %376 = vmatprep.subr.mxu0 0.0
    %377 = vmatpush1.msra.mxu0 0.0
    %378 = vmatprep.subr.mxu0 0.0
    %379 = vmatpush1.msra.mxu0 0.0
    %380 = vmatprep.subr.mxu0 0.0
    %381 = vmatpush1.msra.mxu0 0.0
    %382 = vmatprep.subr.mxu0 0.0
    %383 = vmatpush1.msra.mxu0 0.0
    %384 = vmatprep.subr.mxu0 0.0
    %385 = vmatpush1.msra.mxu0 0.0
    %386 = vmatprep.subr.mxu0 0.0
    %387 = vmatpush1.msra.mxu0 0.0
    %388 = vmatprep.subr.mxu0 0.0
    %389 = vmatpush1.msra.mxu0 %v361
    %390 = vmatprep.subr.mxu0 0.0
    %391 = vmatpush1.msra.mxu0 %v360
    %392 = vmatprep.subr.mxu0 0.0
    %393 = vmatpush1.msra.mxu0 %v359
    %394 = vmatprep.subr.mxu0 0.0
    %395 = vmatpush1.msra.mxu0 %v358
    %396 = vmatprep.subr.mxu0 0.0
    %397 = vmatpush2.msra.mxu0 0.0
    %398 = vmatprep.subr.mxu0 0.0
    %399 = vmatpush2.msra.mxu0 0.0
    %400 = vmatprep.subr.mxu0 0.0
    %401 = vmatpush2.msra.mxu0 0.0
    %402 = vmatprep.subr.mxu0 0.0
    %403 = vmatpush2.msra.mxu0 0.0
    %404 = vmatprep.subr.mxu0 0.0
    %405 = vmatpush2.msra.mxu0 0.0
    %406 = vmatprep.subr.mxu0 0.0
    %407 = vmatpush2.msra.mxu0 0.0
    %408 = vmatprep.subr.mxu0 0.0
    %409 = vmatpush2.msra.mxu0 0.0
    %410 = vmatprep.subr.mxu0 0.0
    %411 = vmatpush2.msra.mxu0 0.0
    %412 = vmatprep.subr.mxu0 0.0
    %413 = vmatpush2.msra.mxu0 0.0
    %414 = vmatprep.subr.mxu0 0.0
    %415 = vmatpush2.msra.mxu0 0.0
    %416 = vmatprep.subr.mxu0 0.0
    %417 = vmatpush2.msra.mxu0 0.0
    %418 = vmatprep.subr.mxu0 0.0
    %419 = vmatpush2.msra.mxu0 0.0
    %420 = vmatprep.subr.mxu0 0.0
    %421 = vmatpush2.msra.mxu0 0.0
    %422 = vmatprep.subr.mxu0 0.0
    %423 = vmatpush2.msra.mxu0 0.0
    %424 = vmatprep.subr.mxu0 0.0
    %425 = vmatpush2.msra.mxu0 0.0
    %426 = vmatprep.subr.mxu0 0.0
    %427 = vmatpush2.msra.mxu0 0.0
    %428 = vmatprep.mubr.f32.mxu0 0.0
    %429 = vmatmul.mubr.f32.gmra.mxu0 %v362
    %v430 = vpop.f32.mrf.mxu0
    %v431 = vadd.f32 0.0, %v430
    %v432 = vpop.f32.mrf.mxu0
    %433 = vdwg.mxu0
    %v434 = vadd.f32 %v357, %v431
    %v435 = vxor.u32 %v434, 2147483648
    %v436 = vmul.f32 %v435, 1.442695
    %v437 = vpow.pop %v436
    %v438 = vadd.f32 %v437, 1.0
    %v439 = vrcp.pop %v438
    %v440 = vmul.f32 1.0, %v439
    %v441 = vtanh.pop %v434
    %v442 = vmul.f32 %v440, %v343
    %444 = vrot.lane.b32.xlu0 %v441, 64
    %v445 = vpop.permute.xlu0 %444
    %v447 = vmul.f32 %v440, %v445
    %449 = vrot.lane.b32.xlu0 %v447, 32
    %v450 = vpop.permute.xlu0 %449
    %v452 = vadd.f32 %v442, %v450
    %v453 = vtanh.pop %v452
    %455 = vrot.lane.b32.xlu0 %v453, 64
    %v456 = vpop.permute.xlu0 %455
    %v458 = vmul.f32 %v440, %v456
    %460 = vrot.lane.b32.xlu0 %v458, 32
    %v461 = vpop.permute.xlu0 %460
    %s463 = scalar_lea.vmem %s4, 12
    %464 = vst.msk [vmem:[%s463] sm:$0xf] %vm136, %v461
    %s465 = scalar_lea.vmem %s0, 16
    %v466 = vld [vmem:[%s465] sm:$0xf]
    %v467 = vld [vmem:[%s1] sm:$0xff]
    %v468 = vld [vmem:[%s1 + $0x8] sm:$0xff]
    %v469 = vld [vmem:[%s1 + $0x10] sm:$0xff]
    %v470 = vld [vmem:[%s1 + $0x18] sm:$0xff]
    %v471 = vsel %vm29, %v461, 0
    %473 = vmatprep.subr.mxu0 0.0
    %474 = vmatpush1.msra.mxu0 0.0
    %475 = vmatprep.subr.mxu0 0.0
    %476 = vmatpush1.msra.mxu0 0.0
    %477 = vmatprep.subr.mxu0 0.0
    %478 = vmatpush1.msra.mxu0 0.0
    %479 = vmatprep.subr.mxu0 0.0
    %480 = vmatpush1.msra.mxu0 0.0
    %481 = vmatprep.subr.mxu0 0.0
    %482 = vmatpush1.msra.mxu0 0.0
    %483 = vmatprep.subr.mxu0 0.0
    %484 = vmatpush1.msra.mxu0 0.0
    %485 = vmatprep.subr.mxu0 0.0
    %486 = vmatpush1.msra.mxu0 0.0
    %487 = vmatprep.subr.mxu0 0.0
    %488 = vmatpush1.msra.mxu0 0.0
    %489 = vmatprep.subr.mxu0 0.0
    %490 = vmatpush1.msra.mxu0 0.0
    %491 = vmatprep.subr.mxu0 0.0
    %492 = vmatpush1.msra.mxu0 0.0
    %493 = vmatprep.subr.mxu0 0.0
    %494 = vmatpush1.msra.mxu0 0.0
    %495 = vmatprep.subr.mxu0 0.0
    %496 = vmatpush1.msra.mxu0 0.0
    %497 = vmatprep.subr.mxu0 0.0
    %498 = vmatpush1.msra.mxu0 %v470
    %499 = vmatprep.subr.mxu0 0.0
    %500 = vmatpush1.msra.mxu0 %v469
    %501 = vmatprep.subr.mxu0 0.0
    %502 = vmatpush1.msra.mxu0 %v468
    %503 = vmatprep.subr.mxu0 0.0
    %504 = vmatpush1.msra.mxu0 %v467
    %505 = vmatprep.subr.mxu0 0.0
    %506 = vmatpush2.msra.mxu0 0.0
    %507 = vmatprep.subr.mxu0 0.0
    %508 = vmatpush2.msra.mxu0 0.0
    %509 = vmatprep.subr.mxu0 0.0
    %510 = vmatpush2.msra.mxu0 0.0
    %511 = vmatprep.subr.mxu0 0.0
    %512 = vmatpush2.msra.mxu0 0.0
    %513 = vmatprep.subr.mxu0 0.0
    %514 = vmatpush2.msra.mxu0 0.0
    %515 = vmatprep.subr.mxu0 0.0
    %516 = vmatpush2.msra.mxu0 0.0
    %517 = vmatprep.subr.mxu0 0.0
    %518 = vmatpush2.msra.mxu0 0.0
    %519 = vmatprep.subr.mxu0 0.0
    %520 = vmatpush2.msra.mxu0 0.0
    %521 = vmatprep.subr.mxu0 0.0
    %522 = vmatpush2.msra.mxu0 0.0
    %523 = vmatprep.subr.mxu0 0.0
    %524 = vmatpush2.msra.mxu0 0.0
    %525 = vmatprep.subr.mxu0 0.0
    %526 = vmatpush2.msra.mxu0 0.0
    %527 = vmatprep.subr.mxu0 0.0
    %528 = vmatpush2.msra.mxu0 0.0
    %529 = vmatprep.subr.mxu0 0.0
    %530 = vmatpush2.msra.mxu0 0.0
    %531 = vmatprep.subr.mxu0 0.0
    %532 = vmatpush2.msra.mxu0 0.0
    %533 = vmatprep.subr.mxu0 0.0
    %534 = vmatpush2.msra.mxu0 0.0
    %535 = vmatprep.subr.mxu0 0.0
    %536 = vmatpush2.msra.mxu0 0.0
    %537 = vmatprep.mubr.f32.mxu0 0.0
    %538 = vmatmul.mubr.f32.gmra.mxu0 %v471
    %v539 = vpop.f32.mrf.mxu0
    %v540 = vadd.f32 0.0, %v539
    %v541 = vpop.f32.mrf.mxu0
    %542 = vdwg.mxu0
    %v543 = vadd.f32 %v466, %v540
    %v544 = vxor.u32 %v543, 2147483648
    %v545 = vmul.f32 %v544, 1.442695
    %v546 = vpow.pop %v545
    %v547 = vadd.f32 %v546, 1.0
    %v548 = vrcp.pop %v547
    %v549 = vmul.f32 1.0, %v548
    %v550 = vtanh.pop %v543
    %v551 = vmul.f32 %v549, %v452
    %553 = vrot.lane.b32.xlu0 %v550, 64
    %v554 = vpop.permute.xlu0 %553
    %v556 = vmul.f32 %v549, %v554
    %558 = vrot.lane.b32.xlu0 %v556, 32
    %v559 = vpop.permute.xlu0 %558
    %v561 = vadd.f32 %v551, %v559
    %v562 = vtanh.pop %v561
    %564 = vrot.lane.b32.xlu0 %v562, 64
    %v565 = vpop.permute.xlu0 %564
    %v567 = vmul.f32 %v549, %v565
    %569 = vrot.lane.b32.xlu0 %v567, 32
    %v570 = vpop.permute.xlu0 %569
    %s572 = scalar_lea.vmem %s4, 16
    %573 = vst.msk [vmem:[%s572] sm:$0xf] %vm136, %v570
    %s574 = scalar_lea.vmem %s0, 20
    %v575 = vld [vmem:[%s574] sm:$0xf]
    %v576 = vld [vmem:[%s1] sm:$0xff]
    %v577 = vld [vmem:[%s1 + $0x8] sm:$0xff]
    %v578 = vld [vmem:[%s1 + $0x10] sm:$0xff]
    %v579 = vld [vmem:[%s1 + $0x18] sm:$0xff]
    %v580 = vsel %vm29, %v570, 0
    %582 = vmatprep.subr.mxu0 0.0
    %583 = vmatpush1.msra.mxu0 0.0
    %584 = vmatprep.subr.mxu0 0.0
    %585 = vmatpush1.msra.mxu0 0.0
    %586 = vmatprep.subr.mxu0 0.0
    %587 = vmatpush1.msra.mxu0 0.0
    %588 = vmatprep.subr.mxu0 0.0
    %589 = vmatpush1.msra.mxu0 0.0
    %590 = vmatprep.subr.mxu0 0.0
    %591 = vmatpush1.msra.mxu0 0.0
    %592 = vmatprep.subr.mxu0 0.0
    %593 = vmatpush1.msra.mxu0 0.0
    %594 = vmatprep.subr.mxu0 0.0
    %595 = vmatpush1.msra.mxu0 0.0
    %596 = vmatprep.subr.mxu0 0.0
    %597 = vmatpush1.msra.mxu0 0.0
    %598 = vmatprep.subr.mxu0 0.0
    %599 = vmatpush1.msra.mxu0 0.0
    %600 = vmatprep.subr.mxu0 0.0
    %601 = vmatpush1.msra.mxu0 0.0
    %602 = vmatprep.subr.mxu0 0.0
    %603 = vmatpush1.msra.mxu0 0.0
    %604 = vmatprep.subr.mxu0 0.0
    %605 = vmatpush1.msra.mxu0 0.0
    %606 = vmatprep.subr.mxu0 0.0
    %607 = vmatpush1.msra.mxu0 %v579
    %608 = vmatprep.subr.mxu0 0.0
    %609 = vmatpush1.msra.mxu0 %v578
    %610 = vmatprep.subr.mxu0 0.0
    %611 = vmatpush1.msra.mxu0 %v577
    %612 = vmatprep.subr.mxu0 0.0
    %613 = vmatpush1.msra.mxu0 %v576
    %614 = vmatprep.subr.mxu0 0.0
    %615 = vmatpush2.msra.mxu0 0.0
    %616 = vmatprep.subr.mxu0 0.0
    %617 = vmatpush2.msra.mxu0 0.0
    %618 = vmatprep.subr.mxu0 0.0
    %619 = vmatpush2.msra.mxu0 0.0
    %620 = vmatprep.subr.mxu0 0.0
    %621 = vmatpush2.msra.mxu0 0.0
    %622 = vmatprep.subr.mxu0 0.0
    %623 = vmatpush2.msra.mxu0 0.0
    %624 = vmatprep.subr.mxu0 0.0
    %625 = vmatpush2.msra.mxu0 0.0
    %626 = vmatprep.subr.mxu0 0.0
    %627 = vmatpush2.msra.mxu0 0.0
    %628 = vmatprep.subr.mxu0 0.0
    %629 = vmatpush2.msra.mxu0 0.0
    %630 = vmatprep.subr.mxu0 0.0
    %631 = vmatpush2.msra.mxu0 0.0
    %632 = vmatprep.subr.mxu0 0.0
    %633 = vmatpush2.msra.mxu0 0.0
    %634 = vmatprep.subr.mxu0 0.0
    %635 = vmatpush2.msra.mxu0 0.0
    %636 = vmatprep.subr.mxu0 0.0
    %637 = vmatpush2.msra.mxu0 0.0
    %638 = vmatprep.subr.mxu0 0.0
    %639 = vmatpush2.msra.mxu0 0.0
    %640 = vmatprep.subr.mxu0 0.0
    %641 = vmatpush2.msra.mxu0 0.0
    %642 = vmatprep.subr.mxu0 0.0
    %643 = vmatpush2.msra.mxu0 0.0
    %644 = vmatprep.subr.mxu0 0.0
    %645 = vmatpush2.msra.mxu0 0.0
    %646 = vmatprep.mubr.f32.mxu0 0.0
    %647 = vmatmul.mubr.f32.gmra.mxu0 %v580
    %v648 = vpop.f32.mrf.mxu0
    %v649 = vadd.f32 0.0, %v648
    %v650 = vpop.f32.mrf.mxu0
    %651 = vdwg.mxu0
    %v652 = vadd.f32 %v575, %v649
    %v653 = vxor.u32 %v652, 2147483648
    %v654 = vmul.f32 %v653, 1.442695
    %v655 = vpow.pop %v654
    %v656 = vadd.f32 %v655, 1.0
    %v657 = vrcp.pop %v656
    %v658 = vmul.f32 1.0, %v657
    %v659 = vtanh.pop %v652
    %v660 = vmul.f32 %v658, %v561
    %662 = vrot.lane.b32.xlu0 %v659, 64
    %v663 = vpop.permute.xlu0 %662
    %v665 = vmul.f32 %v658, %v663
    %667 = vrot.lane.b32.xlu0 %v665, 32
    %v668 = vpop.permute.xlu0 %667
    %v670 = vadd.f32 %v660, %v668
    %v671 = vtanh.pop %v670
    %673 = vrot.lane.b32.xlu0 %v671, 64
    %v674 = vpop.permute.xlu0 %673
    %v676 = vmul.f32 %v658, %v674
    %678 = vrot.lane.b32.xlu0 %v676, 32
    %v679 = vpop.permute.xlu0 %678
    %s681 = scalar_lea.vmem %s4, 20
    %682 = vst.msk [vmem:[%s681] sm:$0xf] %vm136, %v679
    %s683 = scalar_lea.vmem %s0, 24
    %v684 = vld [vmem:[%s683] sm:$0xf]
    %v685 = vld [vmem:[%s1] sm:$0xff]
    %v686 = vld [vmem:[%s1 + $0x8] sm:$0xff]
    %v687 = vld [vmem:[%s1 + $0x10] sm:$0xff]
    %v688 = vld [vmem:[%s1 + $0x18] sm:$0xff]
    %v689 = vsel %vm29, %v679, 0
    %691 = vmatprep.subr.mxu0 0.0
    %692 = vmatpush1.msra.mxu0 0.0
    %693 = vmatprep.subr.mxu0 0.0
    %694 = vmatpush1.msra.mxu0 0.0
    %695 = vmatprep.subr.mxu0 0.0
    %696 = vmatpush1.msra.mxu0 0.0
    %697 = vmatprep.subr.mxu0 0.0
    %698 = vmatpush1.msra.mxu0 0.0
    %699 = vmatprep.subr.mxu0 0.0
    %700 = vmatpush1.msra.mxu0 0.0
    %701 = vmatprep.subr.mxu0 0.0
    %702 = vmatpush1.msra.mxu0 0.0
    %703 = vmatprep.subr.mxu0 0.0
    %704 = vmatpush1.msra.mxu0 0.0
    %705 = vmatprep.subr.mxu0 0.0
    %706 = vmatpush1.msra.mxu0 0.0
    %707 = vmatprep.subr.mxu0 0.0
    %708 = vmatpush1.msra.mxu0 0.0
    %709 = vmatprep.subr.mxu0 0.0
    %710 = vmatpush1.msra.mxu0 0.0
    %711 = vmatprep.subr.mxu0 0.0
    %712 = vmatpush1.msra.mxu0 0.0
    %713 = vmatprep.subr.mxu0 0.0
    %714 = vmatpush1.msra.mxu0 0.0
    %715 = vmatprep.subr.mxu0 0.0
    %716 = vmatpush1.msra.mxu0 %v688
    %717 = vmatprep.subr.mxu0 0.0
    %718 = vmatpush1.msra.mxu0 %v687
    %719 = vmatprep.subr.mxu0 0.0
    %720 = vmatpush1.msra.mxu0 %v686
    %721 = vmatprep.subr.mxu0 0.0
    %722 = vmatpush1.msra.mxu0 %v685
    %723 = vmatprep.subr.mxu0 0.0
    %724 = vmatpush2.msra.mxu0 0.0
    %725 = vmatprep.subr.mxu0 0.0
    %726 = vmatpush2.msra.mxu0 0.0
    %727 = vmatprep.subr.mxu0 0.0
    %728 = vmatpush2.msra.mxu0 0.0
    %729 = vmatprep.subr.mxu0 0.0
    %730 = vmatpush2.msra.mxu0 0.0
    %731 = vmatprep.subr.mxu0 0.0
    %732 = vmatpush2.msra.mxu0 0.0
    %733 = vmatprep.subr.mxu0 0.0
    %734 = vmatpush2.msra.mxu0 0.0
    %735 = vmatprep.subr.mxu0 0.0
    %736 = vmatpush2.msra.mxu0 0.0
    %737 = vmatprep.subr.mxu0 0.0
    %738 = vmatpush2.msra.mxu0 0.0
    %739 = vmatprep.subr.mxu0 0.0
    %740 = vmatpush2.msra.mxu0 0.0
    %741 = vmatprep.subr.mxu0 0.0
    %742 = vmatpush2.msra.mxu0 0.0
    %743 = vmatprep.subr.mxu0 0.0
    %744 = vmatpush2.msra.mxu0 0.0
    %745 = vmatprep.subr.mxu0 0.0
    %746 = vmatpush2.msra.mxu0 0.0
    %747 = vmatprep.subr.mxu0 0.0
    %748 = vmatpush2.msra.mxu0 0.0
    %749 = vmatprep.subr.mxu0 0.0
    %750 = vmatpush2.msra.mxu0 0.0
    %751 = vmatprep.subr.mxu0 0.0
    %752 = vmatpush2.msra.mxu0 0.0
    %753 = vmatprep.subr.mxu0 0.0
    %754 = vmatpush2.msra.mxu0 0.0
    %755 = vmatprep.mubr.f32.mxu0 0.0
    %756 = vmatmul.mubr.f32.gmra.mxu0 %v689
    %v757 = vpop.f32.mrf.mxu0
    %v758 = vadd.f32 0.0, %v757
    %v759 = vpop.f32.mrf.mxu0
    %760 = vdwg.mxu0
    %v761 = vadd.f32 %v684, %v758
    %v762 = vxor.u32 %v761, 2147483648
    %v763 = vmul.f32 %v762, 1.442695
    %v764 = vpow.pop %v763
    %v765 = vadd.f32 %v764, 1.0
    %v766 = vrcp.pop %v765
    %v767 = vmul.f32 1.0, %v766
    %v768 = vtanh.pop %v761
    %v769 = vmul.f32 %v767, %v670
    %771 = vrot.lane.b32.xlu0 %v768, 64
    %v772 = vpop.permute.xlu0 %771
    %v774 = vmul.f32 %v767, %v772
    %776 = vrot.lane.b32.xlu0 %v774, 32
    %v777 = vpop.permute.xlu0 %776
    %v779 = vadd.f32 %v769, %v777
    %v780 = vtanh.pop %v779
    %782 = vrot.lane.b32.xlu0 %v780, 64
    %v783 = vpop.permute.xlu0 %782
    %v785 = vmul.f32 %v767, %v783
    %787 = vrot.lane.b32.xlu0 %v785, 32
    %v788 = vpop.permute.xlu0 %787
    %s790 = scalar_lea.vmem %s4, 24
    %791 = vst.msk [vmem:[%s790] sm:$0xf] %vm136, %v788
    %s792 = scalar_lea.vmem %s0, 28
    %v793 = vld [vmem:[%s792] sm:$0xf]
    %v794 = vld [vmem:[%s1] sm:$0xff]
    %v795 = vld [vmem:[%s1 + $0x8] sm:$0xff]
    %v796 = vld [vmem:[%s1 + $0x10] sm:$0xff]
    %v797 = vld [vmem:[%s1 + $0x18] sm:$0xff]
    %v798 = vsel %vm29, %v788, 0
    %800 = vmatprep.subr.mxu0 0.0
    %801 = vmatpush1.msra.mxu0 0.0
    %802 = vmatprep.subr.mxu0 0.0
    %803 = vmatpush1.msra.mxu0 0.0
    %804 = vmatprep.subr.mxu0 0.0
    %805 = vmatpush1.msra.mxu0 0.0
    %806 = vmatprep.subr.mxu0 0.0
    %807 = vmatpush1.msra.mxu0 0.0
    %808 = vmatprep.subr.mxu0 0.0
    %809 = vmatpush1.msra.mxu0 0.0
    %810 = vmatprep.subr.mxu0 0.0
    %811 = vmatpush1.msra.mxu0 0.0
    %812 = vmatprep.subr.mxu0 0.0
    %813 = vmatpush1.msra.mxu0 0.0
    %814 = vmatprep.subr.mxu0 0.0
    %815 = vmatpush1.msra.mxu0 0.0
    %816 = vmatprep.subr.mxu0 0.0
    %817 = vmatpush1.msra.mxu0 0.0
    %818 = vmatprep.subr.mxu0 0.0
    %819 = vmatpush1.msra.mxu0 0.0
    %820 = vmatprep.subr.mxu0 0.0
    %821 = vmatpush1.msra.mxu0 0.0
    %822 = vmatprep.subr.mxu0 0.0
    %823 = vmatpush1.msra.mxu0 0.0
    %824 = vmatprep.subr.mxu0 0.0
    %825 = vmatpush1.msra.mxu0 %v797
    %826 = vmatprep.subr.mxu0 0.0
    %827 = vmatpush1.msra.mxu0 %v796
    %828 = vmatprep.subr.mxu0 0.0
    %829 = vmatpush1.msra.mxu0 %v795
    %830 = vmatprep.subr.mxu0 0.0
    %831 = vmatpush1.msra.mxu0 %v794
    %832 = vmatprep.subr.mxu0 0.0
    %833 = vmatpush2.msra.mxu0 0.0
    %834 = vmatprep.subr.mxu0 0.0
    %835 = vmatpush2.msra.mxu0 0.0
    %836 = vmatprep.subr.mxu0 0.0
    %837 = vmatpush2.msra.mxu0 0.0
    %838 = vmatprep.subr.mxu0 0.0
    %839 = vmatpush2.msra.mxu0 0.0
    %840 = vmatprep.subr.mxu0 0.0
    %841 = vmatpush2.msra.mxu0 0.0
    %842 = vmatprep.subr.mxu0 0.0
    %843 = vmatpush2.msra.mxu0 0.0
    %844 = vmatprep.subr.mxu0 0.0
    %845 = vmatpush2.msra.mxu0 0.0
    %846 = vmatprep.subr.mxu0 0.0
    %847 = vmatpush2.msra.mxu0 0.0
    %848 = vmatprep.subr.mxu0 0.0
    %849 = vmatpush2.msra.mxu0 0.0
    %850 = vmatprep.subr.mxu0 0.0
    %851 = vmatpush2.msra.mxu0 0.0
    %852 = vmatprep.subr.mxu0 0.0
    %853 = vmatpush2.msra.mxu0 0.0
    %854 = vmatprep.subr.mxu0 0.0
    %855 = vmatpush2.msra.mxu0 0.0
    %856 = vmatprep.subr.mxu0 0.0
    %857 = vmatpush2.msra.mxu0 0.0
    %858 = vmatprep.subr.mxu0 0.0
    %859 = vmatpush2.msra.mxu0 0.0
    %860 = vmatprep.subr.mxu0 0.0
    %861 = vmatpush2.msra.mxu0 0.0
    %862 = vmatprep.subr.mxu0 0.0
    %863 = vmatpush2.msra.mxu0 0.0
    %864 = vmatprep.mubr.f32.mxu0 0.0
    %865 = vmatmul.mubr.f32.gmra.mxu0 %v798
    %v866 = vpop.f32.mrf.mxu0
    %v867 = vadd.f32 0.0, %v866
    %v868 = vpop.f32.mrf.mxu0
    %869 = vdwg.mxu0
    %v870 = vadd.f32 %v793, %v867
    %v871 = vxor.u32 %v870, 2147483648
    %v872 = vmul.f32 %v871, 1.442695
    %v873 = vpow.pop %v872
    %v874 = vadd.f32 %v873, 1.0
    %v875 = vrcp.pop %v874
    %v876 = vmul.f32 1.0, %v875
    %v877 = vtanh.pop %v870
    %v878 = vmul.f32 %v876, %v779
    %880 = vrot.lane.b32.xlu0 %v877, 64
    %v881 = vpop.permute.xlu0 %880
    %v883 = vmul.f32 %v876, %v881
    %885 = vrot.lane.b32.xlu0 %v883, 32
    %v886 = vpop.permute.xlu0 %885
    %v888 = vadd.f32 %v878, %v886
    %v889 = vtanh.pop %v888
    %891 = vrot.lane.b32.xlu0 %v889, 64
    %v892 = vpop.permute.xlu0 %891
    %v894 = vmul.f32 %v876, %v892
    %896 = vrot.lane.b32.xlu0 %v894, 32
    %v897 = vpop.permute.xlu0 %896
    %s899 = scalar_lea.vmem %s4, 28
    %900 = vst.msk [vmem:[%s899] sm:$0xf] %vm136, %v897
    %901 = vst.msk [vmem:[#allocation2] sm:$0xf] %vm136, %v897
    %903 = vrot.lane.b32.xlu0 %v888, 96
    %v904 = vpop.permute.xlu0 %903
    %906 = vst.msk [vmem:[#allocation4] sm:$0xf] %vm136, %v904
    // Predicated region
    $region18: #{char_decoder_forward.1} parent=1 // pred_check
      _
    $region19: #{char_decoder_forward.1} parent=1 // pred_check_branch
      %908 = sbr.rel (0) target = $region21
    $region20: #{char_decoder_forward.1} parent=1 // pred_region
      _
    $region21: #{char_decoder_forward.1} parent=1 // pred_fallthru
      _
    // Predicated region
    $region22: #{char_decoder_forward.1} parent=1 // pred_check
      _
    $region23: #{char_decoder_forward.1} parent=1 // pred_check_branch
      %910 = sbr.rel (0) target = $region25
    $region24: #{char_decoder_forward.1} parent=1 // pred_region
      %s912 = ssub.s32 64, 64
      %913 = vsyncadd [#allocation3], %s912
      %s915 = sshll.u32 [#allocation2], 4
      %s916 = int_to_ptr.vmem [resolvable:$true] %s915
      %918 = dma.vmem_to_hbm [thread:$0]  %s916, 64, %s5, [#allocation3]
    $region25: #{char_decoder_forward.1} parent=1 // pred_fallthru
      _
    // Predicated region
    $region26: #{char_decoder_forward.1} parent=1 // pred_check
      _
    $region27: #{char_decoder_forward.1} parent=1 // pred_check_branch
      %920 = sbr.rel (0) target = $region29
    $region28: #{char_decoder_forward.1} parent=1 // pred_region
      %s922 = ssub.s32 64, 64
      %923 = vsyncadd [#allocation5], %s922
      %s925 = sshll.u32 [#allocation4], 4
      %s926 = int_to_ptr.vmem [resolvable:$true] %s925
      %928 = dma.vmem_to_hbm [thread:$0]  %s926, 64, %s6, [#allocation5]
    $region29: #{char_decoder_forward.1} parent=1 // pred_fallthru
      _
    // Predicated region
    $region30: #{char_decoder_forward.1} parent=1 // pred_check
      _
    $region31: #{char_decoder_forward.1} parent=1 // pred_check_branch
      %930 = sbr.rel (0) target = $region33
    $region32: #{char_decoder_forward.1} parent=1 // pred_region
      _
    $region33: #{char_decoder_forward.1} parent=1 // pred_fallthru
      _
    // Predicated region
    $region34: #{char_decoder_forward.1} parent=1 // pred_check
      _
    $region35: #{char_decoder_forward.1} parent=1 // pred_check_branch
      %932 = sbr.rel (0) target = $region37
    $region36: #{char_decoder_forward.1} parent=1 // pred_region
      %933 = dma.done [#allocation3], 64
    $region37: #{char_decoder_forward.1} parent=1 // pred_fallthru
      _
    // Predicated region
    $region38: #{char_decoder_forward.1} parent=1 // pred_check
      _
    $region39: #{char_decoder_forward.1} parent=1 // pred_check_branch
      %935 = sbr.rel (0) target = $region41
    $region40: #{char_decoder_forward.1} parent=1 // pred_region
      %936 = dma.done [#allocation5], 64
    $region41: #{char_decoder_forward.1} parent=1 // pred_fallthru
      _
    %937 = vsyncpa [#allocation3], 1
    %938 = vsyncpa [#allocation5], 1

</llo_original>
